<compile_context>
chip_gen: v7x
topology: tpu7x:2x2x1
jax: 0.10.0
libtpu: 0.0.40
codegen_flags: <defaults>
</compile_context>

<pallas_src>
import jax
import jax.numpy as jnp
from jax.experimental import pallas as pl
from jax.experimental.pallas import tpu as pltpu


# --------------------------------------------------------------------------
# Kernel
# --------------------------------------------------------------------------
def _attention_kernel(x_ref, w_ref, b_ref, o_ref):
    # x_ref: (BT, S, F) batch block; w_ref: (1, F); b_ref: (1, S); o_ref: (BT, F)
    w = w_ref[...].astype(jnp.float32)                    # (1, F), tiny
    b = b_ref[...].astype(jnp.float32)                    # (1, S), tiny

    # Scores: VPU multiply + lane reduce over F (no N=1 MXU matmul).
    # Dtype promotion (x * f32 w) keeps the math in f32 without holding a
    # separate block-sized f32 copy of x alive across the whole kernel.
    eij = jnp.sum(x_ref[...] * w[None, :, :], axis=-1)    # (BT, S) f32
    eij = jnp.tanh(eij + b)                                # EUP
    a = jnp.exp(eij)                                       # EUP, values in [e^-1, e]

    # Softmax-style normalization; denom is (BT, 1) so an exact divide is free
    # and matches the PyTorch reference bit-for-bit better than approx recip.
    a = a / jnp.sum(a, axis=-1, keepdims=True) + 1e-10     # eps AFTER divide

    # Weighted sum over steps: out[b, f] = sum_s a[b, s] * x[b, s, f].
    out = jnp.sum(x_ref[...] * a[:, :, None], axis=1)      # (BT, F) f32
    o_ref[...] = out.astype(o_ref.dtype)


# --------------------------------------------------------------------------
# Generation-aware sizing helpers
# --------------------------------------------------------------------------
def _ceil_to(x, m):
    return ((x + m - 1) // m) * m


def _tpu_info():
    try:
        return pltpu.get_tpu_info()
    except Exception:
        return None


def _vmem_capacity_bytes(info):
    if info is not None:
        v = getattr(info, "vmem_capacity_bytes", None)
        if isinstance(v, int) and v > 0:
            return v
    return 64 * 1024 * 1024  # conservative default (v7x per-TensorCore VMEM)


def _tensorcores_per_chip(info):
    if info is not None:
        for attr in ("tensorcores_per_chip", "num_tensorcores", "num_cores",
                     "core_count"):
            v = getattr(info, attr, None)
            if isinstance(v, int) and v > 0:
                return max(1, min(2, v))   # only the per-chip TC count matters
    return 1


def _pick_block_b(batch, S, F, itemsize, vmem_budget_bytes, num_cores,
                  target_bytes=4 << 20):
    """Batch-block size: ~4 MiB of real x per grid step, clamped so that
    (2 double-buffered input blocks + ~3 block-sized f32 temporaries) of the
    *padded* VMEM footprint fit the VMEM budget, kept >= num_cores grid steps
    on multi-TC chips, and rounded to the dtype's packed-sublane multiple."""
    row_hbm_bytes = S * F * itemsize
    # Padded VMEM footprint per batch row of one f32 block-sized temporary
    # (lane dim padded to 128, sublane dim to 8 when not full multiples).
    row_vmem_bytes = _ceil_to(S, 8) * _ceil_to(F, 128) * 4
    vmem_rows = max(1, vmem_budget_bytes // (6 * row_vmem_bytes))

    bt = max(1, target_bytes // row_hbm_bytes)          # ~4 MiB of real x / step
    bt = min(bt, vmem_rows)                             # VMEM clamp (v7x-safe)
    if num_cores > 1:                                   # keep both v7x TCs busy
        bt = min(bt, pl.cdiv(batch, num_cores))
    if bt >= batch:
        return batch                                    # full extent: always legal

    sub = max(8, 32 // itemsize)                        # 8 f32 / 16 bf16 / 32 int8
    bt = max(sub, (bt // sub) * sub)
    return min(bt, batch)


# --------------------------------------------------------------------------
# Wrapper
# --------------------------------------------------------------------------
def attention_forward(x, weight, bias, *, block_b=None):
    """x: (B, S, F), weight: (F, 1), bias: (S,) -> (B, F)."""
    B, S, F = x.shape
    info = _tpu_info()
    cap = _vmem_capacity_bytes(info)
    base_limit = min((cap * 3) // 4, 64 * 1024 * 1024)  # 48 MiB on v7x, 64 MiB else

    if block_b is None:
        block_b = _pick_block_b(B, S, F, x.dtype.itemsize, base_limit,
                                _tensorcores_per_chip(info))

    # Make sure the limit we hand Mosaic actually covers the chosen block
    # (2 input buffers + ~3 f32 temps of padded footprint), without exceeding
    # physical VMEM minus headroom.
    row_vmem_bytes = _ceil_to(S, 8) * _ceil_to(F, 128) * 4
    needed = 6 * min(block_b, B) * row_vmem_bytes + (1 << 20)
    vmem_limit = int(min(max(base_limit, needed),
                         max(cap - (4 << 20), 16 << 20)))

    w_row = weight.reshape(1, F)                         # lane-major weight row
    b_row = bias.reshape(1, S)
    grid = (pl.cdiv(B, block_b),)

    return pl.pallas_call(
        _attention_kernel,
        out_shape=jax.ShapeDtypeStruct((B, F), x.dtype),
        grid_spec=pltpu.PrefetchScalarGridSpec(
            num_scalar_prefetch=0,
            grid=grid,
            in_specs=[
                pl.BlockSpec((block_b, S, F), lambda i: (i, 0, 0)),  # x batch block
                pl.BlockSpec((1, F), lambda i: (0, 0)),              # weight (shared)
                pl.BlockSpec((1, S), lambda i: (0, 0)),              # bias (shared)
            ],
            out_specs=pl.BlockSpec((block_b, F), lambda i: (i, 0)),
        ),
        compiler_params=pltpu.CompilerParams(
            dimension_semantics=("parallel",),
            vmem_limit_bytes=vmem_limit,
        ),
    )(x, w_row, b_row)


# --------------------------------------------------------------------------
# Reference + self-check
# --------------------------------------------------------------------------
def _reference(x, weight, bias):
    B, S, F = x.shape
    eij = (x.reshape(-1, F) @ weight).reshape(B, S) + bias
    eij = jnp.tanh(eij)
    a = jnp.exp(eij)
    a = a / jnp.sum(a, axis=1, keepdims=True) + 1e-10
    return jnp.sum(x * a[..., None], axis=1)


if __name__ == "__main__":
    # Small shapes consistent with the module: feature_dim=32, step_dim=8.
    B, S, F = 2, 8, 32
    key = jax.random.PRNGKey(0)
    kx, kw, kx2 = jax.random.split(key, 3)

    x = jax.random.normal(kx, (B, S, F), dtype=jnp.float32)

    # Deterministic parameter init mirroring __init__:
    #   weight: xavier_uniform_ on a (F, 1) tensor; bias: zeros(S)
    bound = (6.0 / (F + 1)) ** 0.5
    weight = jax.random.uniform(kw, (F, 1), dtype=jnp.float32,
                                minval=-bound, maxval=bound)
    bias = jnp.zeros((S,), dtype=jnp.float32)

    out = jax.block_until_ready(attention_forward(x, weight, bias))
    ref = _reference(x, weight, bias)
    assert out.shape == (B, F)
    assert jnp.allclose(out, ref, atol=1e-5, rtol=1e-5), "mismatch vs reference (B=2)"

    # Second check: larger batch with the auto-picked (likely full-extent) block.
    B2 = 20
    x2 = jax.random.normal(kx2, (B2, S, F), dtype=jnp.float32)
    out2 = jax.block_until_ready(attention_forward(x2, weight, bias))
    ref2 = _reference(x2, weight, bias)
    assert out2.shape == (B2, F)
    assert jnp.allclose(out2, ref2, atol=1e-5, rtol=1e-5), "mismatch vs reference (B=20)"

    # Third check: force a multi-step batch-blocked grid with a ragged tail
    # (B=20, BT=8 -> grid=3, last tile partial) to exercise the blocked path.
    out3 = jax.block_until_ready(attention_forward(x2, weight, bias, block_b=8))
    assert jnp.allclose(out3, ref2, atol=1e-5, rtol=1e-5), "mismatch vs reference (blocked)"

    print("KERNEL_OK")
</pallas_src>

<mosaic_0001>
module attributes {stable_mosaic.version = 11 : i64} {
  func.func @_attention_kernel(%arg0: i32, %arg1: memref<2x8x32xf32, #tpu.memory_space<vmem>>, %arg2: memref<1x32xf32, #tpu.memory_space<vmem>>, %arg3: memref<1x8xf32, #tpu.memory_space<vmem>>, %arg4: memref<2x32xf32, #tpu.memory_space<vmem>>) attributes {dimension_semantics = [#tpu.dimension_semantics<parallel>], iteration_bounds = array<i64: 1>, scalar_prefetch = 0 : i64, scratch_operands = 0 : i64, tpu.core_type = #tpu.core_type<tc>, window_params = [{transform_indices = @transform_0, window_bounds = array<i64: 2, 8, 32>}, {pipeline_mode = #tpu.pipeline_mode<synchronous>, transform_indices = @transform_1, window_bounds = array<i64: 1, 32>}, {pipeline_mode = #tpu.pipeline_mode<synchronous>, transform_indices = @transform_2, window_bounds = array<i64: 1, 8>}, {transform_indices = @transform_3, window_bounds = array<i64: 2, 32>}]} {
    %c0 = arith.constant 0 : index
    %c0_0 = arith.constant 0 : index
    %0 = vector.load %arg2[%c0, %c0_0] : memref<1x32xf32, #tpu.memory_space<vmem>>, vector<1x32xf32>
    %c0_1 = arith.constant 0 : index
    %c0_2 = arith.constant 0 : index
    %1 = vector.load %arg3[%c0_1, %c0_2] : memref<1x8xf32, #tpu.memory_space<vmem>>, vector<1x8xf32>
    %c0_3 = arith.constant 0 : index
    %c0_4 = arith.constant 0 : index
    %c0_5 = arith.constant 0 : index
    %2 = vector.load %arg1[%c0_3, %c0_4, %c0_5] : memref<2x8x32xf32, #tpu.memory_space<vmem>>, vector<2x8x32xf32>
    %3 = vector.shape_cast %0 : vector<1x32xf32> to vector<1x1x32xf32>
    %4 = vector.broadcast %3 : vector<1x1x32xf32> to vector<2x8x32xf32>
    %5 = arith.mulf %2, %4 : vector<2x8x32xf32>
    %cst = arith.constant dense<0.000000e+00> : vector<2x8xf32>
    %6 = vector.multi_reduction <add>, %5, %cst [2] : vector<2x8x32xf32> to vector<2x8xf32>
    %7 = vector.broadcast %1 : vector<1x8xf32> to vector<2x8xf32>
    %8 = arith.addf %6, %7 : vector<2x8xf32>
    %9 = math.tanh %8 : vector<2x8xf32>
    %10 = math.exp %9 : vector<2x8xf32>
    %cst_6 = arith.constant dense<0.000000e+00> : vector<2xf32>
    %11 = vector.multi_reduction <add>, %10, %cst_6 [1] : vector<2x8xf32> to vector<2xf32>
    %12 = vector.shape_cast %11 : vector<2xf32> to vector<2x1xf32>
    %13 = vector.broadcast %12 : vector<2x1xf32> to vector<2x8xf32>
    %14 = arith.divf %10, %13 : vector<2x8xf32>
    %cst_7 = arith.constant 1.000000e-10 : f32
    %15 = vector.broadcast %cst_7 : f32 to vector<2x8xf32>
    %16 = arith.addf %14, %15 : vector<2x8xf32>
    %c0_8 = arith.constant 0 : index
    %c0_9 = arith.constant 0 : index
    %c0_10 = arith.constant 0 : index
    %17 = vector.load %arg1[%c0_8, %c0_9, %c0_10] : memref<2x8x32xf32, #tpu.memory_space<vmem>>, vector<2x8x32xf32>
    %18 = vector.shape_cast %16 : vector<2x8xf32> to vector<2x8x1xf32>
    %19 = vector.broadcast %18 : vector<2x8x1xf32> to vector<2x8x32xf32>
    %20 = arith.mulf %17, %19 : vector<2x8x32xf32>
    %cst_11 = arith.constant dense<0.000000e+00> : vector<2x32xf32>
    %21 = vector.multi_reduction <add>, %20, %cst_11 [1] : vector<2x8x32xf32> to vector<2x32xf32>
    %c0_12 = arith.constant 0 : index
    %c0_13 = arith.constant 0 : index
    %22 = vector.load %arg4[%c0_12, %c0_13] : memref<2x32xf32, #tpu.memory_space<vmem>>, vector<2x32xf32>
    tpu.vector_store %arg4[%c0_12, %c0_13], %21 {strides = array<i32>} : memref<2x32xf32, #tpu.memory_space<vmem>>, vector<2x32xf32>,
    return
  }
  func.func @transform_0(%arg0: i32) -> (i32, i32, i32) {
    %c0_i32 = arith.constant 0 : i32
    %c0_i32_0 = arith.constant 0 : i32
    %c0_i32_1 = arith.constant 0 : i32
    return %arg0, %c0_i32, %c0_i32_0 : i32, i32, i32
  }
  func.func @transform_1(%arg0: i32) -> (i32, i32) {
    %c0_i32 = arith.constant 0 : i32
    %c0_i32_0 = arith.constant 0 : i32
    %c0_i32_1 = arith.constant 0 : i32
    return %c0_i32, %c0_i32_0 : i32, i32
  }
  func.func @transform_2(%arg0: i32) -> (i32, i32) {
    %c0_i32 = arith.constant 0 : i32
    %c0_i32_0 = arith.constant 0 : i32
    %c0_i32_1 = arith.constant 0 : i32
    return %c0_i32, %c0_i32_0 : i32, i32
  }
  func.func @transform_3(%arg0: i32) -> (i32, i32) {
    %c0_i32 = arith.constant 0 : i32
    %c0_i32_0 = arith.constant 0 : i32
    return %arg0, %c0_i32 : i32, i32
  }
}

</mosaic_0001>

<llo_original>
// kernel: tpu_custom_call.1
$region0: #{tpu_custom_call.1}
  #allocation0 [shape = 'u32[]', space=smem, size = 0x4, offset = 0x4, fixed_abs, tag = 'smem constant byte address 0x4 - core index']
  #allocation1 [shape = 'u32[144,128]{1,0:T(1,128)}', space=vmem, size = 0x12000, scoped, tag = 'internal scratch']
  %s0 = inlined_call_operand.hbm [shape: f32[2,8,32], index: 0, kind: input, shape index: {}]
  %s1 = inlined_call_operand.vmem [shape: f32[1,32], index: 1, kind: input, shape index: {}]
  %s2 = inlined_call_operand.vmem [shape: f32[1,8], index: 2, kind: input, shape index: {}]
  %s3 = inlined_call_operand.hbm [shape: f32[2,32], index: 3, kind: output, shape index: {}]
  %s4 = sld [smem:[#allocation0]]
  $region26: #{tpu_custom_call.1} parent=0
    _
  %s6 = ssub.s32 1, %s4
  %s7 = scalar_select 0, %s6, %s4
  $region1: #{tpu_custom_call.1} parent=0
    #allocation2 [shape = 'u8[8192]{0}', space=vmem, size = 0x2000, scoped, tag = 'input window, operand 0, single buffered']
    #allocation3 [shape = 's32[1]{0}', space=sflag, size = 0x4, scoped, tag = 'scoped memory for tpu_custom_call.1']
    #allocation4 [shape = 's32[1]{0}', space=sflag, size = 0x4, scoped, tag = 'scoped memory for tpu_custom_call.1']
    #allocation5 [shape = 'u8[1024]{0}', space=vmem, size = 0x400, scoped, tag = 'output window, operand 0, single buffered']
    %8 = vsyncpa [#allocation3], 0
    %9 = vsyncpa [#allocation4], 0
    // Predicated region
    $region2: #{tpu_custom_call.1} parent=1 // pred_check
      _
    $region3: #{tpu_custom_call.1} parent=1 // pred_check_branch
      %11 = sbr.rel (0) target = $region5
    $region4: #{tpu_custom_call.1} parent=1 // pred_region
      %s13 = ssub.s32 256, 256
      %14 = vsyncadd [#allocation3], %s13
      %s15 = sshll.u32 [#allocation2], 4
      %s16 = int_to_ptr.vmem [resolvable:$true] %s15
      %21 = dma.hbm_to_vmem [thread:$0]  %s0, 256, %s16, [#allocation3], 128, 128, 8
    $region5: #{tpu_custom_call.1} parent=1 // pred_fallthru
      _
    // Predicated region
    $region6: #{tpu_custom_call.1} parent=1 // pred_check
      _
    $region7: #{tpu_custom_call.1} parent=1 // pred_check_branch
      %23 = sbr.rel (0) target = $region9
    $region8: #{tpu_custom_call.1} parent=1 // pred_region
      _
    $region9: #{tpu_custom_call.1} parent=1 // pred_fallthru
      _
    // Predicated region
    $region10: #{tpu_custom_call.1} parent=1 // pred_check
      _
    $region11: #{tpu_custom_call.1} parent=1 // pred_check_branch
      %25 = sbr.rel (0) target = $region13
    $region12: #{tpu_custom_call.1} parent=1 // pred_region
      _
    $region13: #{tpu_custom_call.1} parent=1 // pred_fallthru
      _
    // Predicated region
    $region14: #{tpu_custom_call.1} parent=1 // pred_check
      _
    $region15: #{tpu_custom_call.1} parent=1 // pred_check_branch
      %27 = sbr.rel (0) target = $region17
    $region16: #{tpu_custom_call.1} parent=1 // pred_region
      %28 = dma.done [#allocation3], 256
    $region17: #{tpu_custom_call.1} parent=1 // pred_fallthru
      _
    %v29 = vld [vmem:[%s1] sm:$0x1]
    %v30 = vld [vmem:[%s2] sm:$0x1]
    %v31 = vld [vmem:[#allocation2] sm:$0xff]
    %v32 = vld [vmem:[#allocation2 + $0x8] sm:$0xff]
    %v34 = vlaneseq
    %v35 = vshrl.u32 %v34, 7
    %v36 = vsub.s32 0, %v35
    %v37 = vrot.slane %v29, %v36
    %v39 = vmul.f32 %v31, %v37
    %v40 = vmul.f32 %v32, %v37
    %vm41 = vcmask 261120
    %v42 = vsel %vm41, %v39, 0.0
    %43 = vadd.xlane.f32.xlu0 %v42
    %v44 = vpop.xlane.xlu0 %43
    %v45 = vsel %vm41, %v40, 0.0
    %46 = vadd.xlane.f32.xlu0 %v45
    %v47 = vpop.xlane.xlu0 %46
    %v49 = vlaneseq
    %v50 = vshrl.u32 %v49, 7
    %v51 = vsub.s32 0, %v50
    %v52 = vrot.slane %v30, %v51
    %54 = vbcast.lane.b32.xlu0 %v52, 256
    %v55 = vpop.permute.xlu0 %54
    %v57 = vadd.f32 %v44, %v55
    %v58 = vadd.f32 %v47, %v55
    %v59 = vtanh.pop %v57
    %v60 = vtanh.pop %v58
    %v61 = vmul.f32 %v59, 1.442695
    %v62 = vpow.pop %v61
    %v63 = vmul.f32 %v60, 1.442695
    %v64 = vpow.pop %v63
    %67 = vset.pattern.permute.xlu0 0
    %68 = vperm.xlu0 %67, %v62
    %v69 = vpop.permute.xlu0 %68
    %70 = vset.pattern.permute.xlu0 0
    %71 = vperm.xlu0 %70, %v64
    %v72 = vpop.permute.xlu0 %71
    %v73 = vlaneseq
    %v74 = vand.u32 %v73, 127
    %v75 = vlaneseq
    %v76 = vshrl.u32 %v75, 7
    %v77 = vsub.s32 %v74, %v76
    %v78 = vrot.slane %v69, %v77
    %v79 = vlaneseq
    %v80 = vshrl.u32 %v79, 7
    %v81 = vsub.s32 %v74, %v80
    %v82 = vrot.slane %v72, %v81
    %vm83 = vcmask 1041409
    %v84 = vsel %vm83, %v82, %v78
    %vm86 = vcmask 58368
    %v87 = vsel %vm86, %v84, 0.0
    %88 = vadd.xlane.f32.xlu0 %v87
    %v89 = vpop.xlane.xlu0 %88
    %v91 = vlaneseq
    %v92 = vshrl.u32 %v91, 7
    %v93 = vsub.s32 0, %v92
    %v94 = vrot.slane %v89, %v93
    %v95 = vlaneseq
    %v96 = vshrl.u32 %v95, 7
    %v97 = vsub.s32 1, %v96
    %v98 = vrot.slane %v89, %v97
    %v101 = vrcp.pop %v94
    %v102 = vmul.f32 %v62, %v101
    %v103 = vrcp.pop %v98
    %v104 = vmul.f32 %v64, %v103
    %v105 = vadd.f32 %v102, 1e-10
    %v106 = vadd.f32 %v104, 1e-10
    %108 = vset.pattern.permute.xlu0 0
    %109 = vperm.xlu0 %108, %v105
    %v110 = vpop.permute.xlu0 %109
    %113 = vset.pattern.permute.xlu0 0
    %114 = vperm.xlu0 %113, %v106
    %v115 = vpop.permute.xlu0 %114
    %v117 = vmul.f32 %v31, %v110
    %v118 = vmul.f32 %v32, %v115
    %v119 = vsel %vm41, %v117, 0.0
    %v120 = vrot.slane %v119, 4
    %v121 = vadd.f32 %v119, %v120
    %v122 = vrot.slane %v121, 2
    %v123 = vadd.f32 %v121, %v122
    %v124 = vrot.slane %v123, 1
    %v125 = vadd.f32 %v123, %v124
    %v126 = vsel %vm41, %v118, 0.0
    %v127 = vrot.slane %v126, 4
    %v128 = vadd.f32 %v126, %v127
    %v129 = vrot.slane %v128, 2
    %v130 = vadd.f32 %v128, %v129
    %v131 = vrot.slane %v130, 1
    %v132 = vadd.f32 %v130, %v131
    %v135 = vsel %vm83, %v132, %v125
    %vm137 = vcmask 254976
    %138 = vst.msk [vmem:[#allocation5] sm:$0x3] %vm137, %v135
    // Predicated region
    $region18: #{tpu_custom_call.1} parent=1 // pred_check
      _
    $region19: #{tpu_custom_call.1} parent=1 // pred_check_branch
      %140 = sbr.rel (0) target = $region21
    $region20: #{tpu_custom_call.1} parent=1 // pred_region
      %s142 = ssub.s32 32, 32
      %143 = vsyncadd [#allocation4], %s142
      %s145 = sshll.u32 [#allocation5], 4
      %s146 = int_to_ptr.vmem [resolvable:$true] %s145
      %148 = dma.vmem_to_hbm [thread:$0]  %s146, 32, %s3, [#allocation4]
    $region21: #{tpu_custom_call.1} parent=1 // pred_fallthru
      _
    // Predicated region
    $region22: #{tpu_custom_call.1} parent=1 // pred_check
      _
    $region23: #{tpu_custom_call.1} parent=1 // pred_check_branch
      %150 = sbr.rel (0) target = $region25
    $region24: #{tpu_custom_call.1} parent=1 // pred_region
      %151 = dma.done [#allocation4], 32
    $region25: #{tpu_custom_call.1} parent=1 // pred_fallthru
      _
    %152 = vsyncpa [#allocation3], 1
    %153 = vsyncpa [#allocation4], 1

</llo_original>
